<compile_context>
chip_gen: v7x
topology: tpu7x:2x2x1
jax: 0.10.0
libtpu: 0.0.40
codegen_flags: <defaults>
</compile_context>

<pallas_src>
import functools

import jax
import jax.numpy as jnp
from jax.experimental import pallas as pl
from jax.experimental.pallas import tpu as pltpu


def _moe_gate_kernel(x_ref, w_ref, idx_ref, score_ref, *, top_k: int):
    # MXU matmul in native dtype, f32 accumulation.
    logits = jnp.dot(x_ref[...], w_ref[...],
                     preferred_element_type=jnp.float32)        # (TM, E) f32

    tm, n_experts = logits.shape

    # Softmax numerators only. Ordering of e == ordering of softmax(logits),
    # so top-k is done on e; the normalization is deferred to the k selected
    # values: k multiplies + one EUP reciprocal instead of a (TM, E) divide.
    m = jnp.max(logits, axis=-1, keepdims=True)                 # (TM, 1)
    e = jnp.exp(logits - m)                                     # (TM, E)
    denom_inv = pl.reciprocal(jnp.sum(e, axis=-1, keepdims=True),
                              approx=True)                      # (TM, 1), EUP

    expert_ids = jax.lax.broadcasted_iota(jnp.int32, (tm, n_experts), 1)

    # Iterative exact top-k: max, arg-select (lowest index on ties, same as
    # lax.top_k / sorted argmax), mask, repeat.
    # A fused bit-packed (value, index) key would halve the XLU reductions but
    # sacrifices low mantissa bits on near-ties, so the exact form is kept.
    work = e
    top_vals = []
    top_ids = []
    for _ in range(top_k):
        mx = jnp.max(work, axis=-1, keepdims=True)                      # (TM, 1)
        sel = jnp.min(jnp.where(work == mx, expert_ids, n_experts),
                      axis=-1, keepdims=True)                           # (TM, 1)
        top_vals.append(mx)
        top_ids.append(sel)
        work = jnp.where(expert_ids == sel, -jnp.inf, work)

    idx_ref[...] = jnp.concatenate(top_ids, axis=-1)                    # (TM, k) i32
    score_ref[...] = (jnp.concatenate(top_vals, axis=-1)
                      * denom_inv).astype(score_ref.dtype)              # (TM, k)


def _default_token_tile(n_tok: int, d_hidden: int, itemsize: int) -> int:
    """Bounded, 8-aligned token tile sized against the scoped-VMEM default.

    Budget ~24 MiB for the double-buffered x tile (32 MiB scoped default on all
    generations; v7x has only 64 MiB physical VMEM), leaving headroom for the
    weight block, the (tm, E) intermediates and the outputs.
    """
    budget_bytes = 24 * 1024 * 1024
    tm_cap = budget_bytes // (2 * max(1, d_hidden) * itemsize)
    tm_cap = max(8, min(1024, (tm_cap // 8) * 8))
    if n_tok <= tm_cap:
        return n_tok            # full extent: always a legal block shape
    return tm_cap               # multiple of 8; last block may be partial


def moe_gate(x: jax.Array, w_g: jax.Array, top_k: int, tm: int | None = None):
    """Returns (topk_indices, topk_scores) like the PyTorch MoEGate.forward.

    x:   (..., d_hidden)
    w_g: (d_hidden, n_experts)
    """
    *lead, d_hidden = x.shape
    n_experts = w_g.shape[-1]
    x2 = x.reshape(-1, d_hidden)
    n_tok = x2.shape[0]

    if tm is None:
        tm = _default_token_tile(n_tok, d_hidden, x2.dtype.itemsize)
    tm = min(tm, n_tok)

    grid = (pl.cdiv(n_tok, tm),)
    kernel = functools.partial(_moe_gate_kernel, top_k=top_k)

    # Note: for very large d_hidden (tile still dominating VMEM, esp. v7x),
    # add a K grid axis with a (tm, E) f32 accumulator instead of loading the
    # full (tm, D) slab per step. Not needed at these shapes.
    def run(weight_spec):
        return pl.pallas_call(
            kernel,
            out_shape=(
                jax.ShapeDtypeStruct((n_tok, top_k), jnp.int32),
                jax.ShapeDtypeStruct((n_tok, top_k), x.dtype),
            ),
            grid=grid,
            in_specs=[
                pl.BlockSpec((tm, d_hidden), lambda i: (i, 0)),
                weight_spec,
            ],
            out_specs=(
                pl.BlockSpec((tm, top_k), lambda i: (i, 0)),
                pl.BlockSpec((tm, top_k), lambda i: (i, 0)),
            ),
            compiler_params=pltpu.CompilerParams(
                dimension_semantics=("parallel",)),
        )(x2, w_g)

    # The weight block index_map is constant across the grid: request a single
    # VMEM buffer for it (the default double buffer wastes D*E*dtype).  Fall
    # back to the default spec if this JAX version rejects Buffered(1).
    try:
        w_spec = pl.BlockSpec((d_hidden, n_experts), lambda i: (0, 0),
                              pipeline_mode=pl.Buffered(1))
        idx, scores = run(w_spec)
    except Exception:  # version-dependent feature; plain spec is always valid
        idx, scores = run(pl.BlockSpec((d_hidden, n_experts), lambda i: (0, 0)))

    return idx.reshape(*lead, top_k), scores.reshape(*lead, top_k)


if __name__ == "__main__":
    # config = {n_experts_per_token: 2, n_routed_experts: 8, d_hidden: 32}
    top_k = 2
    num_experts = 8
    d_hidden = 32
    batch, seq = 2, 8

    key = jax.random.PRNGKey(0)
    kx, kw = jax.random.split(key)
    x = jax.random.normal(kx, (batch, seq, d_hidden), dtype=jnp.float32)
    # Deterministic synthetic gate weight (the module leaves W_g as None).
    w_g = jax.random.normal(kw, (d_hidden, num_experts), dtype=jnp.float32) / (d_hidden ** 0.5)

    # tm=8 -> 2 token blocks: exercises the tiled / pipelined multi-step grid.
    topk_idx, topk_scores = moe_gate(x, w_g, top_k, tm=8)
    jax.block_until_ready((topk_idx, topk_scores))

    # Default-tile path should agree with the explicitly tiled path.
    topk_idx_d, topk_scores_d = moe_gate(x, w_g, top_k)
    jax.block_until_ready((topk_idx_d, topk_scores_d))
    assert jnp.array_equal(topk_idx_d, topk_idx)
    assert jnp.allclose(topk_scores_d, topk_scores, atol=1e-5, rtol=1e-5)

    # Reference check (plain JAX): softmax + lax.top_k (lowest index on ties,
    # same order our iterative extraction produces). Scores use the EUP
    # approximate reciprocal for normalization, so compare at 5e-3.
    ref_scores = jax.nn.softmax(x @ w_g, axis=-1)
    ref_vals, ref_idx = jax.lax.top_k(ref_scores, top_k)
    assert jnp.array_equal(topk_idx, ref_idx.astype(jnp.int32))
    assert jnp.allclose(topk_scores, ref_vals, atol=5e-3, rtol=5e-3)
    assert topk_idx.shape == (batch, seq, top_k)
    assert topk_scores.shape == (batch, seq, top_k)

    print("KERNEL_OK")
</pallas_src>

<mosaic_0001>
module attributes {stable_mosaic.version = 11 : i64} {
  func.func @_moe_gate_kernel(%arg0: i32, %arg1: memref<8x32xf32, #tpu.memory_space<vmem>>, %arg2: memref<32x8xf32, #tpu.memory_space<vmem>>, %arg3: memref<8x2xi32, #tpu.memory_space<vmem>>, %arg4: memref<8x2xf32, #tpu.memory_space<vmem>>) attributes {dimension_semantics = [#tpu.dimension_semantics<parallel>], iteration_bounds = array<i64: 2>, scalar_prefetch = 0 : i64, scratch_operands = 0 : i64, tpu.core_type = #tpu.core_type<tc>, window_params = [{transform_indices = @transform_0, window_bounds = array<i64: 8, 32>}, {pipeline_mode = #tpu.pipeline_mode<synchronous>, transform_indices = @transform_1, window_bounds = array<i64: 32, 8>}, {transform_indices = @transform_2, window_bounds = array<i64: 8, 2>}, {transform_indices = @transform_3, window_bounds = array<i64: 8, 2>}]} {
    %c0 = arith.constant 0 : index
    %c0_0 = arith.constant 0 : index
    %0 = vector.load %arg1[%c0, %c0_0] : memref<8x32xf32, #tpu.memory_space<vmem>>, vector<8x32xf32>
    %c0_1 = arith.constant 0 : index
    %c0_2 = arith.constant 0 : index
    %1 = vector.load %arg2[%c0_1, %c0_2] : memref<32x8xf32, #tpu.memory_space<vmem>>, vector<32x8xf32>
    %cst = arith.constant dense<0.000000e+00> : vector<8x8xf32>
    %2 = tpu.matmul %0, %1, %cst {dimension_numbers = #tpu.dot_dimension_numbers<[1], [0], [0], [1], [0, 0, 1, 1], [], []>} : vector<8x32xf32>, vector<32x8xf32>, vector<8x8xf32> -> vector<8x8xf32>
    %cst_3 = arith.constant dense<0xFF800000> : vector<8xf32>
    %3 = vector.multi_reduction <maximumf>, %2, %cst_3 [1] : vector<8x8xf32> to vector<8xf32>
    %4 = vector.shape_cast %3 : vector<8xf32> to vector<8x1xf32>
    %5 = vector.broadcast %4 : vector<8x1xf32> to vector<8x8xf32>
    %6 = arith.subf %2, %5 : vector<8x8xf32>
    %7 = math.exp %6 : vector<8x8xf32>
    %cst_4 = arith.constant dense<0.000000e+00> : vector<8xf32>
    %8 = vector.multi_reduction <add>, %7, %cst_4 [1] : vector<8x8xf32> to vector<8xf32>
    %9 = vector.shape_cast %8 : vector<8xf32> to vector<8x1xf32>
    %10 = tpu.reciprocal %9 {approx = true} : vector<8x1xf32> -> vector<8x1xf32>
    %11 = tpu.iota {dimensions = array<i32: 1>} : vector<8x8xi32>
    %cst_5 = arith.constant dense<0xFF800000> : vector<8xf32>
    %12 = vector.multi_reduction <maximumf>, %7, %cst_5 [1] : vector<8x8xf32> to vector<8xf32>
    %13 = vector.shape_cast %12 : vector<8xf32> to vector<8x1xf32>
    %14 = vector.broadcast %13 : vector<8x1xf32> to vector<8x8xf32>
    %15 = arith.cmpf oeq, %7, %14 : vector<8x8xf32>
    %c8_i32 = arith.constant 8 : i32
    %16 = vector.broadcast %c8_i32 : i32 to vector<8x8xi32>
    %17 = arith.select %15, %11, %16 : vector<8x8xi1>, vector<8x8xi32>
    %cst_6 = arith.constant dense<2147483647> : vector<8xi32>
    %18 = vector.multi_reduction <minsi>, %17, %cst_6 [1] : vector<8x8xi32> to vector<8xi32>
    %19 = vector.shape_cast %18 : vector<8xi32> to vector<8x1xi32>
    %20 = vector.broadcast %19 : vector<8x1xi32> to vector<8x8xi32>
    %21 = arith.cmpi eq, %11, %20 : vector<8x8xi32>
    %cst_7 = arith.constant 0xFF800000 : f32
    %22 = vector.broadcast %cst_7 : f32 to vector<8x8xf32>
    %23 = arith.select %21, %22, %7 : vector<8x8xi1>, vector<8x8xf32>
    %cst_8 = arith.constant dense<0xFF800000> : vector<8xf32>
    %24 = vector.multi_reduction <maximumf>, %23, %cst_8 [1] : vector<8x8xf32> to vector<8xf32>
    %25 = vector.shape_cast %24 : vector<8xf32> to vector<8x1xf32>
    %26 = vector.broadcast %25 : vector<8x1xf32> to vector<8x8xf32>
    %27 = arith.cmpf oeq, %23, %26 : vector<8x8xf32>
    %c8_i32_9 = arith.constant 8 : i32
    %28 = vector.broadcast %c8_i32_9 : i32 to vector<8x8xi32>
    %29 = arith.select %27, %11, %28 : vector<8x8xi1>, vector<8x8xi32>
    %cst_10 = arith.constant dense<2147483647> : vector<8xi32>
    %30 = vector.multi_reduction <minsi>, %29, %cst_10 [1] : vector<8x8xi32> to vector<8xi32>
    %31 = vector.shape_cast %30 : vector<8xi32> to vector<8x1xi32>
    %32 = tpu.concatenate %19, %31 in 1 : vector<8x1xi32>, vector<8x1xi32> -> vector<8x2xi32>
    %c0_11 = arith.constant 0 : index
    %c0_12 = arith.constant 0 : index
    %33 = vector.load %arg3[%c0_11, %c0_12] : memref<8x2xi32, #tpu.memory_space<vmem>>, vector<8x2xi32>
    tpu.vector_store %arg3[%c0_11, %c0_12], %32 {strides = array<i32>} : memref<8x2xi32, #tpu.memory_space<vmem>>, vector<8x2xi32>,
    %34 = tpu.concatenate %13, %25 in 1 : vector<8x1xf32>, vector<8x1xf32> -> vector<8x2xf32>
    %35 = vector.broadcast %10 : vector<8x1xf32> to vector<8x2xf32>
    %36 = arith.mulf %34, %35 : vector<8x2xf32>
    %c0_13 = arith.constant 0 : index
    %c0_14 = arith.constant 0 : index
    %37 = vector.load %arg4[%c0_13, %c0_14] : memref<8x2xf32, #tpu.memory_space<vmem>>, vector<8x2xf32>
    tpu.vector_store %arg4[%c0_13, %c0_14], %36 {strides = array<i32>} : memref<8x2xf32, #tpu.memory_space<vmem>>, vector<8x2xf32>,
    return
  }
  func.func @transform_0(%arg0: i32) -> (i32, i32) {
    %c0_i32 = arith.constant 0 : i32
    %c0_i32_0 = arith.constant 0 : i32
    return %arg0, %c0_i32 : i32, i32
  }
  func.func @transform_1(%arg0: i32) -> (i32, i32) {
    %c0_i32 = arith.constant 0 : i32
    %c0_i32_0 = arith.constant 0 : i32
    %c0_i32_1 = arith.constant 0 : i32
    return %c0_i32, %c0_i32_0 : i32, i32
  }
  func.func @transform_2(%arg0: i32) -> (i32, i32) {
    %c0_i32 = arith.constant 0 : i32
    %c0_i32_0 = arith.constant 0 : i32
    return %arg0, %c0_i32 : i32, i32
  }
  func.func @transform_3(%arg0: i32) -> (i32, i32) {
    %c0_i32 = arith.constant 0 : i32
    %c0_i32_0 = arith.constant 0 : i32
    return %arg0, %c0_i32 : i32, i32
  }
}

module attributes {stable_mosaic.version = 11 : i64} {
  func.func @_moe_gate_kernel(%arg0: i32, %arg1: memref<8x32xf32, #tpu.memory_space<vmem>>, %arg2: memref<32x8xf32, #tpu.memory_space<vmem>>, %arg3: memref<8x2xi32, #tpu.memory_space<vmem>>, %arg4: memref<8x2xf32, #tpu.memory_space<vmem>>) attributes {dimension_semantics = [#tpu.dimension_semantics<parallel>], iteration_bounds = array<i64: 2>, scalar_prefetch = 0 : i64, scratch_operands = 0 : i64, tpu.core_type = #tpu.core_type<tc>, window_params = [{transform_indices = @transform_0, window_bounds = array<i64: 8, 32>}, {pipeline_mode = #tpu.pipeline_mode<synchronous>, transform_indices = @transform_1, window_bounds = array<i64: 32, 8>}, {transform_indices = @transform_2, window_bounds = array<i64: 8, 2>}, {transform_indices = @transform_3, window_bounds = array<i64: 8, 2>}]} {
    %c0 = arith.constant 0 : index
    %c0_0 = arith.constant 0 : index
    %0 = vector.load %arg1[%c0, %c0_0] : memref<8x32xf32, #tpu.memory_space<vmem>>, vector<8x32xf32>
    %c0_1 = arith.constant 0 : index
    %c0_2 = arith.constant 0 : index
    %1 = vector.load %arg2[%c0_1, %c0_2] : memref<32x8xf32, #tpu.memory_space<vmem>>, vector<32x8xf32>
    %cst = arith.constant dense<0.000000e+00> : vector<8x8xf32>
    %2 = tpu.matmul %0, %1, %cst {dimension_numbers = #tpu.dot_dimension_numbers<[1], [0], [0], [1], [0, 0, 1, 1], [], []>} : vector<8x32xf32>, vector<32x8xf32>, vector<8x8xf32> -> vector<8x8xf32>
    %cst_3 = arith.constant dense<0xFF800000> : vector<8xf32>
    %3 = vector.multi_reduction <maximumf>, %2, %cst_3 [1] : vector<8x8xf32> to vector<8xf32>
    %4 = vector.shape_cast %3 : vector<8xf32> to vector<8x1xf32>
    %5 = vector.broadcast %4 : vector<8x1xf32> to vector<8x8xf32>
    %6 = arith.subf %2, %5 : vector<8x8xf32>
    %7 = math.exp %6 : vector<8x8xf32>
    %cst_4 = arith.constant dense<0.000000e+00> : vector<8xf32>
    %8 = vector.multi_reduction <add>, %7, %cst_4 [1] : vector<8x8xf32> to vector<8xf32>
    %9 = vector.shape_cast %8 : vector<8xf32> to vector<8x1xf32>
    %10 = tpu.reciprocal %9 {approx = true} : vector<8x1xf32> -> vector<8x1xf32>
    %11 = tpu.iota {dimensions = array<i32: 1>} : vector<8x8xi32>
    %cst_5 = arith.constant dense<0xFF800000> : vector<8xf32>
    %12 = vector.multi_reduction <maximumf>, %7, %cst_5 [1] : vector<8x8xf32> to vector<8xf32>
    %13 = vector.shape_cast %12 : vector<8xf32> to vector<8x1xf32>
    %14 = vector.broadcast %13 : vector<8x1xf32> to vector<8x8xf32>
    %15 = arith.cmpf oeq, %7, %14 : vector<8x8xf32>
    %c8_i32 = arith.constant 8 : i32
    %16 = vector.broadcast %c8_i32 : i32 to vector<8x8xi32>
    %17 = arith.select %15, %11, %16 : vector<8x8xi1>, vector<8x8xi32>
    %cst_6 = arith.constant dense<2147483647> : vector<8xi32>
    %18 = vector.multi_reduction <minsi>, %17, %cst_6 [1] : vector<8x8xi32> to vector<8xi32>
    %19 = vector.shape_cast %18 : vector<8xi32> to vector<8x1xi32>
    %20 = vector.broadcast %19 : vector<8x1xi32> to vector<8x8xi32>
    %21 = arith.cmpi eq, %11, %20 : vector<8x8xi32>
    %cst_7 = arith.constant 0xFF800000 : f32
    %22 = vector.broadcast %cst_7 : f32 to vector<8x8xf32>
    %23 = arith.select %21, %22, %7 : vector<8x8xi1>, vector<8x8xf32>
    %cst_8 = arith.constant dense<0xFF800000> : vector<8xf32>
    %24 = vector.multi_reduction <maximumf>, %23, %cst_8 [1] : vector<8x8xf32> to vector<8xf32>
    %25 = vector.shape_cast %24 : vector<8xf32> to vector<8x1xf32>
    %26 = vector.broadcast %25 : vector<8x1xf32> to vector<8x8xf32>
    %27 = arith.cmpf oeq, %23, %26 : vector<8x8xf32>
    %c8_i32_9 = arith.constant 8 : i32
    %28 = vector.broadcast %c8_i32_9 : i32 to vector<8x8xi32>
    %29 = arith.select %27, %11, %28 : vector<8x8xi1>, vector<8x8xi32>
    %cst_10 = arith.constant dense<2147483647> : vector<8xi32>
    %30 = vector.multi_reduction <minsi>, %29, %cst_10 [1] : vector<8x8xi32> to vector<8xi32>
    %31 = vector.shape_cast %30 : vector<8xi32> to vector<8x1xi32>
    %32 = tpu.concatenate %19, %31 in 1 : vector<8x1xi32>, vector<8x1xi32> -> vector<8x2xi32>
    %c0_11 = arith.constant 0 : index
    %c0_12 = arith.constant 0 : index
    %33 = vector.load %arg3[%c0_11, %c0_12] : memref<8x2xi32, #tpu.memory_space<vmem>>, vector<8x2xi32>
    tpu.vector_store %arg3[%c0_11, %c0_12], %32 {strides = array<i32>} : memref<8x2xi32, #tpu.memory_space<vmem>>, vector<8x2xi32>,
    %34 = tpu.concatenate %13, %25 in 1 : vector<8x1xf32>, vector<8x1xf32> -> vector<8x2xf32>
    %35 = vector.broadcast %10 : vector<8x1xf32> to vector<8x2xf32>
    %36 = arith.mulf %34, %35 : vector<8x2xf32>
    %c0_13 = arith.constant 0 : index
    %c0_14 = arith.constant 0 : index
    %37 = vector.load %arg4[%c0_13, %c0_14] : memref<8x2xf32, #tpu.memory_space<vmem>>, vector<8x2xf32>
    tpu.vector_store %arg4[%c0_13, %c0_14], %36 {strides = array<i32>} : memref<8x2xf32, #tpu.memory_space<vmem>>, vector<8x2xf32>,
    return
  }
  func.func @transform_0(%arg0: i32) -> (i32, i32) {
    %c0_i32 = arith.constant 0 : i32
    %c0_i32_0 = arith.constant 0 : i32
    return %arg0, %c0_i32 : i32, i32
  }
  func.func @transform_1(%arg0: i32) -> (i32, i32) {
    %c0_i32 = arith.constant 0 : i32
    %c0_i32_0 = arith.constant 0 : i32
    %c0_i32_1 = arith.constant 0 : i32
    return %c0_i32, %c0_i32_0 : i32, i32
  }
  func.func @transform_2(%arg0: i32) -> (i32, i32) {
    %c0_i32 = arith.constant 0 : i32
    %c0_i32_0 = arith.constant 0 : i32
    return %arg0, %c0_i32 : i32, i32
  }
  func.func @transform_3(%arg0: i32) -> (i32, i32) {
    %c0_i32 = arith.constant 0 : i32
    %c0_i32_0 = arith.constant 0 : i32
    return %arg0, %c0_i32 : i32, i32
  }
}

</mosaic_0001>

<llo_original>
// kernel: tpu_custom_call.1
$region0: #{tpu_custom_call.1}
  #allocation0 [shape = 'u32[]', space=smem, size = 0x4, offset = 0x4, fixed_abs, tag = 'smem constant byte address 0x4 - core index']
  #allocation1 [shape = 'u32[144,128]{1,0:T(1,128)}', space=vmem, size = 0x12000, scoped, tag = 'internal scratch']
  %s0 = inlined_call_operand.vmem [shape: f32[16,32], index: 0, kind: input, shape index: {}]
  %s1 = inlined_call_operand.vmem [shape: f32[32,8], index: 1, kind: input, shape index: {}]
  %s2 = inlined_call_operand.vmem [shape: s32[16,2], index: 2, kind: output, shape index: {0}]
  %s3 = inlined_call_operand.vmem [shape: f32[16,2], index: 3, kind: output, shape index: {1}]
  %4 = xla_tuple %s2, %s3
  %s5 = sld [smem:[#allocation0]]
  $region49: #{tpu_custom_call.1} parent=0
    _
  %s7 = ssub.s32 1, %s5
  %s8 = scalar_select 0, %s7, %s5
  loop: start=0, step=1, limit=4
  $region2: #{tpu_custom_call.1} parent=0 // loop_pre_header
    _
  $region3: #{tpu_custom_call.1} parent=0 // loop_header
    %s10 = sphi 0, %s14
    %p11 = scmp.ge.s32.totalorder %s10, 4
    %s20 = sphi 0, %s22
    %s23 = sphi 0, %s20
    %s24 = sphi 0, %s23
    %s40 = sphi 0, %s24
    %s44 = sphi 0, %s44
    %s46 = sphi 0, %s44
    %s47 = sphi 0, %s46
    %s61 = sphi 0, %s47
    %s67 = sphi 0, %s69
    %s70 = sphi 0, %s67
    %s71 = sphi 0, %s70
    %s87 = sphi 0, %s71
    %s93 = sphi 0, %s95
    %s96 = sphi 0, %s93
    %s97 = sphi 0, %s96
    %s113 = sphi 0, %s97
  $region4: #{tpu_custom_call.1} parent=0 // loop_header_branch
    %13 = sbr.rel (%p11) target = $region8
  $region5: #{tpu_custom_call.1} parent=0 // loop_body
    %s15 = ssub.s32 %s10, 1
    %s16 = ssub.s32 %s10, 2
    %s17 = sadd.s32 %s10, 1
    %s18 = ssub.s32 %s10, %s17
    %p19 = scmp.eq.s32.totalorder %s18, 0
    %s21 = sadd.s32 %s20, 1
    %s22 = scalar_select %p19, %s20, %s21
    %p25 = pneg %p19
    %p26 = scmp.eq.s32.totalorder %s10, 1
    %p27 = por %p25, %p26
    %p28 = scmp.ne.s32.totalorder %s20, %s23
    %p29 = scmp.eq.s32.totalorder %s10, 0
    %p30 = por %p28, %p29
    %p31 = scmp.ne.s32.totalorder %s20, %s23
    %p32 = scmp.eq.s32.totalorder %s15, 1
    %p33 = por %p31, %p32
    %p34 = scmp.ne.s32.totalorder %s23, %s24
    %p35 = scmp.eq.s32.totalorder %s15, 0
    %p36 = por %p34, %p35
    %p37 = scmp.ne.s32.totalorder %s23, %s24
    %p38 = scmp.eq.s32.totalorder %s16, 1
    %p39 = por %p37, %p38
    %p41 = scmp.ne.s32.totalorder %s24, %s40
    %p42 = scmp.eq.s32.totalorder %s16, 0
    %p43 = por %p41, %p42
    %s45 = sadd.s32 %s44, 1
    %p48 = scmp.eq.s32.totalorder %s10, 1
    %p49 = scmp.ne.s32.totalorder %s44, %s46
    %p50 = scmp.eq.s32.totalorder %s10, 0
    %p51 = por %p49, %p50
    %p52 = scmp.ne.s32.totalorder %s44, %s46
    %p53 = scmp.eq.s32.totalorder %s15, 1
    %p54 = por %p52, %p53
    %p55 = scmp.ne.s32.totalorder %s46, %s47
    %p56 = scmp.eq.s32.totalorder %s15, 0
    %p57 = por %p55, %p56
    %p58 = scmp.ne.s32.totalorder %s46, %s47
    %p59 = scmp.eq.s32.totalorder %s16, 1
    %p60 = por %p58, %p59
    %p62 = scmp.ne.s32.totalorder %s47, %s61
    %p63 = scmp.eq.s32.totalorder %s16, 0
    %p64 = por %p62, %p63
    %s65 = ssub.s32 %s10, %s17
    %p66 = scmp.eq.s32.totalorder %s65, 0
    %s68 = sadd.s32 %s67, 1
    %s69 = scalar_select %p66, %s67, %s68
    %p72 = pneg %p66
    %p73 = scmp.eq.s32.totalorder %s10, 1
    %p74 = por %p72, %p73
    %p75 = scmp.ne.s32.totalorder %s67, %s70
    %p76 = scmp.eq.s32.totalorder %s10, 0
    %p77 = por %p75, %p76
    %p78 = scmp.ne.s32.totalorder %s67, %s70
    %p79 = scmp.eq.s32.totalorder %s15, 1
    %p80 = por %p78, %p79
    %p81 = scmp.ne.s32.totalorder %s70, %s71
    %p82 = scmp.eq.s32.totalorder %s15, 0
    %p83 = por %p81, %p82
    %p84 = scmp.ne.s32.totalorder %s70, %s71
    %p85 = scmp.eq.s32.totalorder %s16, 1
    %p86 = por %p84, %p85
    %p88 = scmp.ne.s32.totalorder %s71, %s87
    %p89 = scmp.eq.s32.totalorder %s16, 0
    %p90 = por %p88, %p89
    %s91 = ssub.s32 %s10, %s17
    %p92 = scmp.eq.s32.totalorder %s91, 0
    %s94 = sadd.s32 %s93, 1
    %s95 = scalar_select %p92, %s93, %s94
    %p98 = pneg %p92
    %p99 = scmp.eq.s32.totalorder %s10, 1
    %p100 = por %p98, %p99
    %p101 = scmp.ne.s32.totalorder %s93, %s96
    %p102 = scmp.eq.s32.totalorder %s10, 0
    %p103 = por %p101, %p102
    %p104 = scmp.ne.s32.totalorder %s93, %s96
    %p105 = scmp.eq.s32.totalorder %s15, 1
    %p106 = por %p104, %p105
    %p107 = scmp.ne.s32.totalorder %s96, %s97
    %p108 = scmp.eq.s32.totalorder %s15, 0
    %p109 = por %p107, %p108
    %p110 = scmp.ne.s32.totalorder %s96, %s97
    %p111 = scmp.eq.s32.totalorder %s16, 1
    %p112 = por %p110, %p111
    %p114 = scmp.ne.s32.totalorder %s97, %s113
    %p115 = scmp.eq.s32.totalorder %s16, 0
    %p116 = por %p114, %p115
    %p117 = scmp.le.s32.totalorder 1, %s10
    %p118 = scmp.lt.s32.totalorder %s10, 3
    %p119 = pnand %p117, %p118
    %p120 = pneg %p119
    // Predicated region
    $region9: #{tpu_custom_call.1} parent=5 // pred_check
      _
    $region10: #{tpu_custom_call.1} parent=5 // pred_check_branch
      %122 = sbr.rel (%p119) target = $region12
    $region11: #{tpu_custom_call.1} parent=5 // pred_region
      %s123 = ssub.s32 %s10, 1
      // Predicated region
      $region13: #{tpu_custom_call.1} parent=11 // pred_check
        %p124 = pneg %p57
      $region14: #{tpu_custom_call.1} parent=11 // pred_check_branch
        %126 = sbr.rel (%p124) target = $region16
      $region15: #{tpu_custom_call.1} parent=11 // pred_region
        _
      $region16: #{tpu_custom_call.1} parent=11 // pred_fallthru
        _
    $region12: #{tpu_custom_call.1} parent=5 // pred_fallthru
      _
    %p127 = scmp.lt.s32.totalorder %s10, 2
    // Predicated region
    $region17: #{tpu_custom_call.1} parent=5 // pred_check
      %p128 = pneg %p127
    $region18: #{tpu_custom_call.1} parent=5 // pred_check_branch
      %130 = sbr.rel (%p128) target = $region20
    $region19: #{tpu_custom_call.1} parent=5 // pred_region
      // Predicated region
      $region21: #{tpu_custom_call.1} parent=19 // pred_check
        %p131 = pneg %p30
      $region22: #{tpu_custom_call.1} parent=19 // pred_check_branch
        %133 = sbr.rel (%p131) target = $region24
      $region23: #{tpu_custom_call.1} parent=19 // pred_region
        %p134 = scmp.lt.s32.totalorder %s10, 1
        %s135 = scalar_select %p134, %s10, 1
        %s136 = smul.addr %s135, 8
        %s137 = scalar_lea.vmem %s0, %s136
      $region24: #{tpu_custom_call.1} parent=19 // pred_fallthru
        _
    $region20: #{tpu_custom_call.1} parent=5 // pred_fallthru
      _
    %p138 = scmp.le.s32.totalorder 1, %s10
    %p139 = scmp.lt.s32.totalorder %s10, 3
    %p140 = pnand %p138, %p139
    %p141 = pneg %p140
    // Predicated region
    $region25: #{tpu_custom_call.1} parent=5 // pred_check
      _
    $region26: #{tpu_custom_call.1} parent=5 // pred_check_branch
      %143 = sbr.rel (%p140) target = $region28
    $region27: #{tpu_custom_call.1} parent=5 // pred_region
      %s144 = ssub.s32 %s10, 1
      %p145 = scmp.lt.s32.totalorder %s15, 1
      %s146 = scalar_select %p145, %s15, 1
      %s147 = smul.addr %s146, 8
      %s148 = scalar_lea.vmem %s0, %s147
      %p149 = pneg %p36
      %p150 = pneg %p33
      %p151 = pneg %p57
      %p152 = pneg %p54
      %p153 = pneg %p83
      %p154 = pneg %p80
      %p155 = scmp.lt.s32.totalorder %s15, 1
      %s156 = scalar_select %p155, %s15, 1
      %s157 = smul.addr %s156, 8
      %s158 = scalar_lea.vmem %s2, %s157
      %p159 = pneg %p109
      %p160 = pneg %p106
      %p161 = scmp.lt.s32.totalorder %s15, 1
      %s162 = scalar_select %p161, %s15, 1
      %s163 = smul.addr %s162, 8
      %s164 = scalar_lea.vmem %s3, %s163
      %p165 = scmp.lt.s32.totalorder %s15, 1
      %s166 = scalar_select %p165, %s15, 1
      %s167 = smul.addr %s166, 8
      %s168 = scalar_lea.vmem %s0, %s167
      %p169 = scmp.lt.s32.totalorder %s15, 1
      %s170 = scalar_select %p169, %s15, 1
      %s171 = smul.addr %s170, 8
      %s172 = scalar_lea.vmem %s2, %s171
      %p173 = scmp.lt.s32.totalorder %s15, 1
      %s174 = scalar_select %p173, %s15, 1
      %s175 = smul.addr %s174, 8
      %s176 = scalar_lea.vmem %s3, %s175
      %v177 = vld [vmem:[%s168] sm:$0xff]
      %v178 = vld [vmem:[%s1] sm:$0xff]
      %v179 = vld [vmem:[%s1 + $0x8] sm:$0xff]
      %v180 = vld [vmem:[%s1 + $0x10] sm:$0xff]
      %v181 = vld [vmem:[%s1 + $0x18] sm:$0xff]
      %vm182 = vcmask 261120
      %v184 = vsel %vm182, %v177, 0
      %186 = vmatprep.subr.mxu0 0.0
      %187 = vmatpush1.msra.mxu0 %v178
      %188 = vmatprep.subr.mxu0 0.0
      %189 = vmatpush1.msra.mxu0 %v179
      %190 = vmatprep.subr.mxu0 0.0
      %191 = vmatpush1.msra.mxu0 %v180
      %192 = vmatprep.subr.mxu0 0.0
      %193 = vmatpush1.msra.mxu0 %v181
      %194 = vmatprep.subr.mxu0 0.0
      %195 = vmatpush1.msra.mxu0 0.0
      %196 = vmatprep.subr.mxu0 0.0
      %197 = vmatpush1.msra.mxu0 0.0
      %198 = vmatprep.subr.mxu0 0.0
      %199 = vmatpush1.msra.mxu0 0.0
      %200 = vmatprep.subr.mxu0 0.0
      %201 = vmatpush1.msra.mxu0 0.0
      %202 = vmatprep.subr.mxu0 0.0
      %203 = vmatpush1.msra.mxu0 0.0
      %204 = vmatprep.subr.mxu0 0.0
      %205 = vmatpush1.msra.mxu0 0.0
      %206 = vmatprep.subr.mxu0 0.0
      %207 = vmatpush1.msra.mxu0 0.0
      %208 = vmatprep.subr.mxu0 0.0
      %209 = vmatpush1.msra.mxu0 0.0
      %210 = vmatprep.subr.mxu0 0.0
      %211 = vmatpush1.msra.mxu0 0.0
      %212 = vmatprep.subr.mxu0 0.0
      %213 = vmatpush1.msra.mxu0 0.0
      %214 = vmatprep.subr.mxu0 0.0
      %215 = vmatpush1.msra.mxu0 0.0
      %216 = vmatprep.subr.mxu0 0.0
      %217 = vmatpush1.msra.mxu0 0.0
      %218 = vmatprep.subr.mxu0 0.0
      %219 = vmatpush1.msra.mxu0 0.0
      %220 = vmatprep.subr.mxu0 0.0
      %221 = vmatpush1.msra.mxu0 0.0
      %222 = vmatprep.subr.mxu0 0.0
      %223 = vmatpush1.msra.mxu0 0.0
      %224 = vmatprep.subr.mxu0 0.0
      %225 = vmatpush1.msra.mxu0 0.0
      %226 = vmatprep.subr.mxu0 0.0
      %227 = vmatpush1.msra.mxu0 0.0
      %228 = vmatprep.subr.mxu0 0.0
      %229 = vmatpush1.msra.mxu0 0.0
      %230 = vmatprep.subr.mxu0 0.0
      %231 = vmatpush1.msra.mxu0 0.0
      %232 = vmatprep.subr.mxu0 0.0
      %233 = vmatpush1.msra.mxu0 0.0
      %234 = vmatprep.subr.mxu0 0.0
      %235 = vmatpush1.msra.mxu0 0.0
      %236 = vmatprep.subr.mxu0 0.0
      %237 = vmatpush1.msra.mxu0 0.0
      %238 = vmatprep.subr.mxu0 0.0
      %239 = vmatpush1.msra.mxu0 0.0
      %240 = vmatprep.subr.mxu0 0.0
      %241 = vmatpush1.msra.mxu0 0.0
      %242 = vmatprep.subr.mxu0 0.0
      %243 = vmatpush1.msra.mxu0 0.0
      %244 = vmatprep.subr.mxu0 0.0
      %245 = vmatpush1.msra.mxu0 0.0
      %246 = vmatprep.subr.mxu0 0.0
      %247 = vmatpush1.msra.mxu0 0.0
      %248 = vmatprep.subr.mxu0 0.0
      %249 = vmatpush1.msra.mxu0 0.0
      %250 = vmatprep.mubr.f32.mxu0 0.0
      %251 = vmatmul.mubr.f32.gmra.mrb[0].mxu0 %v184
      %v252 = vpop.f32.mrb[0].mxu0
      %v253 = vadd.f32 0.0, %v252
      %v254 = vpop.f32.mrb[0].mxu0
      %255 = vdwg.mxu0
      %vm256 = vcmask 64512
      %v257 = vsel %vm256, %v253, -inf
      %258 = vmax.xlane.f32.xlu0 %v257
      %v259 = vpop.xlane.xlu0 %258
      %v260 = vsub.f32 %v253, %v259
      %v261 = vmul.f32 %v260, 1.442695
      %v262 = vpow.pop %v261
      %v263 = vsel %vm256, %v262, 0.0
      %264 = vadd.xlane.f32.xlu0 %v263
      %v265 = vpop.xlane.xlu0 %264
      %v266 = vrcp.pop %v265
      %v267 = vlaneseq
      %v268 = vand.u32 %v267, 127
      %v269 = vsel %vm256, %v262, -inf
      %270 = vmax.xlane.f32.xlu0 %v269
      %v271 = vpop.xlane.xlu0 %270
      %vm272 = vcmp.eq.f32.partialorder %v262, %v271
      %v273 = vsel %vm272, %v268, 8
      %v274 = vsel %vm256, %v273, 2147483647
      %v275 = vand.u32 %v274, 65535
      %v276 = vshra.s32 %v274, 16
      %v277 = vcvt.s32.f32 %v275
      %v278 = vcvt.s32.f32 %v276
      %279 = vmin.xlane.f32.xlu0 %v278
      %v280 = vpop.xlane.xlu0 %279
      %vm281 = vcmp.eq.f32.partialorder %v278, %v280
      %v282 = vsel %vm281, %v277, inf
      %283 = vmin.xlane.f32.xlu0 %v282
      %v284 = vpop.xlane.xlu0 %283
      %v285 = vcvt.f32.s32 %v284
      %v286 = vcvt.f32.s32 %v280
      %v287 = vshll.u32 %v286, 16
      %v288 = vadd.s32 %v287, %v285
      %vm289 = vcmp.eq.s32.totalorder %v268, %v288
      %v290 = vsel %vm289, -inf, %v262
      %v291 = vsel %vm256, %v290, -inf
      %292 = vmax.xlane.f32.xlu0 %v291
      %v293 = vpop.xlane.xlu0 %292
      %vm294 = vcmp.eq.f32.partialorder %v290, %v293
      %v295 = vsel %vm294, %v268, 8
      %v296 = vsel %vm256, %v295, 2147483647
      %v297 = vand.u32 %v296, 65535
      %v298 = vshra.s32 %v296, 16
      %v299 = vcvt.s32.f32 %v297
      %v300 = vcvt.s32.f32 %v298
      %301 = vmin.xlane.f32.xlu0 %v300
      %v302 = vpop.xlane.xlu0 %301
      %vm303 = vcmp.eq.f32.partialorder %v300, %v302
      %v304 = vsel %vm303, %v299, inf
      %305 = vmin.xlane.f32.xlu0 %v304
      %v306 = vpop.xlane.xlu0 %305
      %v307 = vcvt.f32.s32 %v306
      %v308 = vcvt.f32.s32 %v302
      %v309 = vshll.u32 %v308, 16
      %v310 = vadd.s32 %v309, %v307
      %vm311 = vcmask 7168
      %v312 = vsel %vm311, %v288, %v310
      %vm313 = vcmask 15360
      %314 = vst.msk [vmem:[%s172] sm:$0xff] %vm313, %v312
      %v315 = vsel %vm311, %v271, %v293
      %v316 = vmul.f32 %v315, %v266
      %317 = vst.msk [vmem:[%s176] sm:$0xff] %vm313, %v316
      %p318 = scmp.lt.s32.totalorder %s15, 1
      %s319 = scalar_select %p318, %s15, 1
      %s320 = smul.addr %s319, 8
      %s321 = scalar_lea.vmem %s2, %s320
      %p322 = scmp.lt.s32.totalorder %s15, 1
      %s323 = scalar_select %p322, %s15, 1
      %s324 = smul.addr %s323, 8
      %s325 = scalar_lea.vmem %s3, %s324
      // Predicated region
      $region29: #{tpu_custom_call.1} parent=27 // pred_check
        %p326 = pneg %p80
      $region30: #{tpu_custom_call.1} parent=27 // pred_check_branch
        %328 = sbr.rel (%p326) target = $region32
      $region31: #{tpu_custom_call.1} parent=27 // pred_region
        _
      $region32: #{tpu_custom_call.1} parent=27 // pred_fallthru
        _
      // Predicated region
      $region33: #{tpu_custom_call.1} parent=27 // pred_check
        %p329 = pneg %p106
      $region34: #{tpu_custom_call.1} parent=27 // pred_check_branch
        %331 = sbr.rel (%p329) target = $region36
      $region35: #{tpu_custom_call.1} parent=27 // pred_region
        _
      $region36: #{tpu_custom_call.1} parent=27 // pred_fallthru
        _
    $region28: #{tpu_custom_call.1} parent=5 // pred_fallthru
      _
    %p332 = scmp.le.s32.totalorder 2, %s10
    // Predicated region
    $region37: #{tpu_custom_call.1} parent=5 // pred_check
      %p333 = pneg %p332
    $region38: #{tpu_custom_call.1} parent=5 // pred_check_branch
      %335 = sbr.rel (%p333) target = $region40
    $region39: #{tpu_custom_call.1} parent=5 // pred_region
      %s336 = ssub.s32 %s10, 2
      // Predicated region
      $region41: #{tpu_custom_call.1} parent=39 // pred_check
        %p337 = pneg %p86
      $region42: #{tpu_custom_call.1} parent=39 // pred_check_branch
        %339 = sbr.rel (%p337) target = $region44
      $region43: #{tpu_custom_call.1} parent=39 // pred_region
        %p340 = scmp.lt.s32.totalorder %s16, 1
        %s341 = scalar_select %p340, %s16, 1
        %s342 = smul.addr %s341, 8
        %s343 = scalar_lea.vmem %s2, %s342
      $region44: #{tpu_custom_call.1} parent=39 // pred_fallthru
        _
      // Predicated region
      $region45: #{tpu_custom_call.1} parent=39 // pred_check
        %p344 = pneg %p112
      $region46: #{tpu_custom_call.1} parent=39 // pred_check_branch
        %346 = sbr.rel (%p344) target = $region48
      $region47: #{tpu_custom_call.1} parent=39 // pred_region
        %p347 = scmp.lt.s32.totalorder %s16, 1
        %s348 = scalar_select %p347, %s16, 1
        %s349 = smul.addr %s348, 8
        %s350 = scalar_lea.vmem %s3, %s349
      $region48: #{tpu_custom_call.1} parent=39 // pred_fallthru
        _
    $region40: #{tpu_custom_call.1} parent=5 // pred_fallthru
      _
  $region6: #{tpu_custom_call.1} parent=0 // loop_footer
    %s14 = sadd.s32 1, %s10
  $region7: #{tpu_custom_call.1} parent=0 // loop_footer_branch
    %9 = sbr.rel target = $region3
  $region8: #{tpu_custom_call.1} parent=0 // loop_exit
    _

// kernel: tpu_custom_call.1
$region0: #{tpu_custom_call.1}
  #allocation0 [shape = 'u32[]', space=smem, size = 0x4, offset = 0x4, fixed_abs, tag = 'smem constant byte address 0x4 - core index']
  #allocation1 [shape = 'u32[144,128]{1,0:T(1,128)}', space=vmem, size = 0x12000, scoped, tag = 'internal scratch']
  %s0 = inlined_call_operand.vmem [shape: f32[16,32], index: 0, kind: input, shape index: {}]
  %s1 = inlined_call_operand.vmem [shape: f32[32,8], index: 1, kind: input, shape index: {}]
  %s2 = inlined_call_operand.vmem [shape: s32[16,2], index: 2, kind: output, shape index: {0}]
  %s3 = inlined_call_operand.vmem [shape: f32[16,2], index: 3, kind: output, shape index: {1}]
  %4 = xla_tuple %s2, %s3
  %s5 = sld [smem:[#allocation0]]
  $region49: #{tpu_custom_call.1} parent=0
    _
  %s7 = ssub.s32 1, %s5
  %s8 = scalar_select 0, %s7, %s5
  loop: start=0, step=1, limit=4
  $region2: #{tpu_custom_call.1} parent=0 // loop_pre_header
    _
  $region3: #{tpu_custom_call.1} parent=0 // loop_header
    %s10 = sphi 0, %s14
    %p11 = scmp.ge.s32.totalorder %s10, 4
    %s20 = sphi 0, %s22
    %s23 = sphi 0, %s20
    %s24 = sphi 0, %s23
    %s40 = sphi 0, %s24
    %s44 = sphi 0, %s44
    %s46 = sphi 0, %s44
    %s47 = sphi 0, %s46
    %s61 = sphi 0, %s47
    %s67 = sphi 0, %s69
    %s70 = sphi 0, %s67
    %s71 = sphi 0, %s70
    %s87 = sphi 0, %s71
    %s93 = sphi 0, %s95
    %s96 = sphi 0, %s93
    %s97 = sphi 0, %s96
    %s113 = sphi 0, %s97
  $region4: #{tpu_custom_call.1} parent=0 // loop_header_branch
    %13 = sbr.rel (%p11) target = $region8
  $region5: #{tpu_custom_call.1} parent=0 // loop_body
    %s15 = ssub.s32 %s10, 1
    %s16 = ssub.s32 %s10, 2
    %s17 = sadd.s32 %s10, 1
    %s18 = ssub.s32 %s10, %s17
    %p19 = scmp.eq.s32.totalorder %s18, 0
    %s21 = sadd.s32 %s20, 1
    %s22 = scalar_select %p19, %s20, %s21
    %p25 = pneg %p19
    %p26 = scmp.eq.s32.totalorder %s10, 1
    %p27 = por %p25, %p26
    %p28 = scmp.ne.s32.totalorder %s20, %s23
    %p29 = scmp.eq.s32.totalorder %s10, 0
    %p30 = por %p28, %p29
    %p31 = scmp.ne.s32.totalorder %s20, %s23
    %p32 = scmp.eq.s32.totalorder %s15, 1
    %p33 = por %p31, %p32
    %p34 = scmp.ne.s32.totalorder %s23, %s24
    %p35 = scmp.eq.s32.totalorder %s15, 0
    %p36 = por %p34, %p35
    %p37 = scmp.ne.s32.totalorder %s23, %s24
    %p38 = scmp.eq.s32.totalorder %s16, 1
    %p39 = por %p37, %p38
    %p41 = scmp.ne.s32.totalorder %s24, %s40
    %p42 = scmp.eq.s32.totalorder %s16, 0
    %p43 = por %p41, %p42
    %s45 = sadd.s32 %s44, 1
    %p48 = scmp.eq.s32.totalorder %s10, 1
    %p49 = scmp.ne.s32.totalorder %s44, %s46
    %p50 = scmp.eq.s32.totalorder %s10, 0
    %p51 = por %p49, %p50
    %p52 = scmp.ne.s32.totalorder %s44, %s46
    %p53 = scmp.eq.s32.totalorder %s15, 1
    %p54 = por %p52, %p53
    %p55 = scmp.ne.s32.totalorder %s46, %s47
    %p56 = scmp.eq.s32.totalorder %s15, 0
    %p57 = por %p55, %p56
    %p58 = scmp.ne.s32.totalorder %s46, %s47
    %p59 = scmp.eq.s32.totalorder %s16, 1
    %p60 = por %p58, %p59
    %p62 = scmp.ne.s32.totalorder %s47, %s61
    %p63 = scmp.eq.s32.totalorder %s16, 0
    %p64 = por %p62, %p63
    %s65 = ssub.s32 %s10, %s17
    %p66 = scmp.eq.s32.totalorder %s65, 0
    %s68 = sadd.s32 %s67, 1
    %s69 = scalar_select %p66, %s67, %s68
    %p72 = pneg %p66
    %p73 = scmp.eq.s32.totalorder %s10, 1
    %p74 = por %p72, %p73
    %p75 = scmp.ne.s32.totalorder %s67, %s70
    %p76 = scmp.eq.s32.totalorder %s10, 0
    %p77 = por %p75, %p76
    %p78 = scmp.ne.s32.totalorder %s67, %s70
    %p79 = scmp.eq.s32.totalorder %s15, 1
    %p80 = por %p78, %p79
    %p81 = scmp.ne.s32.totalorder %s70, %s71
    %p82 = scmp.eq.s32.totalorder %s15, 0
    %p83 = por %p81, %p82
    %p84 = scmp.ne.s32.totalorder %s70, %s71
    %p85 = scmp.eq.s32.totalorder %s16, 1
    %p86 = por %p84, %p85
    %p88 = scmp.ne.s32.totalorder %s71, %s87
    %p89 = scmp.eq.s32.totalorder %s16, 0
    %p90 = por %p88, %p89
    %s91 = ssub.s32 %s10, %s17
    %p92 = scmp.eq.s32.totalorder %s91, 0
    %s94 = sadd.s32 %s93, 1
    %s95 = scalar_select %p92, %s93, %s94
    %p98 = pneg %p92
    %p99 = scmp.eq.s32.totalorder %s10, 1
    %p100 = por %p98, %p99
    %p101 = scmp.ne.s32.totalorder %s93, %s96
    %p102 = scmp.eq.s32.totalorder %s10, 0
    %p103 = por %p101, %p102
    %p104 = scmp.ne.s32.totalorder %s93, %s96
    %p105 = scmp.eq.s32.totalorder %s15, 1
    %p106 = por %p104, %p105
    %p107 = scmp.ne.s32.totalorder %s96, %s97
    %p108 = scmp.eq.s32.totalorder %s15, 0
    %p109 = por %p107, %p108
    %p110 = scmp.ne.s32.totalorder %s96, %s97
    %p111 = scmp.eq.s32.totalorder %s16, 1
    %p112 = por %p110, %p111
    %p114 = scmp.ne.s32.totalorder %s97, %s113
    %p115 = scmp.eq.s32.totalorder %s16, 0
    %p116 = por %p114, %p115
    %p117 = scmp.le.s32.totalorder 1, %s10
    %p118 = scmp.lt.s32.totalorder %s10, 3
    %p119 = pnand %p117, %p118
    %p120 = pneg %p119
    // Predicated region
    $region9: #{tpu_custom_call.1} parent=5 // pred_check
      _
    $region10: #{tpu_custom_call.1} parent=5 // pred_check_branch
      %122 = sbr.rel (%p119) target = $region12
    $region11: #{tpu_custom_call.1} parent=5 // pred_region
      %s123 = ssub.s32 %s10, 1
      // Predicated region
      $region13: #{tpu_custom_call.1} parent=11 // pred_check
        %p124 = pneg %p57
      $region14: #{tpu_custom_call.1} parent=11 // pred_check_branch
        %126 = sbr.rel (%p124) target = $region16
      $region15: #{tpu_custom_call.1} parent=11 // pred_region
        _
      $region16: #{tpu_custom_call.1} parent=11 // pred_fallthru
        _
    $region12: #{tpu_custom_call.1} parent=5 // pred_fallthru
      _
    %p127 = scmp.lt.s32.totalorder %s10, 2
    // Predicated region
    $region17: #{tpu_custom_call.1} parent=5 // pred_check
      %p128 = pneg %p127
    $region18: #{tpu_custom_call.1} parent=5 // pred_check_branch
      %130 = sbr.rel (%p128) target = $region20
    $region19: #{tpu_custom_call.1} parent=5 // pred_region
      // Predicated region
      $region21: #{tpu_custom_call.1} parent=19 // pred_check
        %p131 = pneg %p30
      $region22: #{tpu_custom_call.1} parent=19 // pred_check_branch
        %133 = sbr.rel (%p131) target = $region24
      $region23: #{tpu_custom_call.1} parent=19 // pred_region
        %p134 = scmp.lt.s32.totalorder %s10, 1
        %s135 = scalar_select %p134, %s10, 1
        %s136 = smul.addr %s135, 8
        %s137 = scalar_lea.vmem %s0, %s136
      $region24: #{tpu_custom_call.1} parent=19 // pred_fallthru
        _
    $region20: #{tpu_custom_call.1} parent=5 // pred_fallthru
      _
    %p138 = scmp.le.s32.totalorder 1, %s10
    %p139 = scmp.lt.s32.totalorder %s10, 3
    %p140 = pnand %p138, %p139
    %p141 = pneg %p140
    // Predicated region
    $region25: #{tpu_custom_call.1} parent=5 // pred_check
      _
    $region26: #{tpu_custom_call.1} parent=5 // pred_check_branch
      %143 = sbr.rel (%p140) target = $region28
    $region27: #{tpu_custom_call.1} parent=5 // pred_region
      %s144 = ssub.s32 %s10, 1
      %p145 = scmp.lt.s32.totalorder %s15, 1
      %s146 = scalar_select %p145, %s15, 1
      %s147 = smul.addr %s146, 8
      %s148 = scalar_lea.vmem %s0, %s147
      %p149 = pneg %p36
      %p150 = pneg %p33
      %p151 = pneg %p57
      %p152 = pneg %p54
      %p153 = pneg %p83
      %p154 = pneg %p80
      %p155 = scmp.lt.s32.totalorder %s15, 1
      %s156 = scalar_select %p155, %s15, 1
      %s157 = smul.addr %s156, 8
      %s158 = scalar_lea.vmem %s2, %s157
      %p159 = pneg %p109
      %p160 = pneg %p106
      %p161 = scmp.lt.s32.totalorder %s15, 1
      %s162 = scalar_select %p161, %s15, 1
      %s163 = smul.addr %s162, 8
      %s164 = scalar_lea.vmem %s3, %s163
      %p165 = scmp.lt.s32.totalorder %s15, 1
      %s166 = scalar_select %p165, %s15, 1
      %s167 = smul.addr %s166, 8
      %s168 = scalar_lea.vmem %s0, %s167
      %p169 = scmp.lt.s32.totalorder %s15, 1
      %s170 = scalar_select %p169, %s15, 1
      %s171 = smul.addr %s170, 8
      %s172 = scalar_lea.vmem %s2, %s171
      %p173 = scmp.lt.s32.totalorder %s15, 1
      %s174 = scalar_select %p173, %s15, 1
      %s175 = smul.addr %s174, 8
      %s176 = scalar_lea.vmem %s3, %s175
      %v177 = vld [vmem:[%s168] sm:$0xff]
      %v178 = vld [vmem:[%s1] sm:$0xff]
      %v179 = vld [vmem:[%s1 + $0x8] sm:$0xff]
      %v180 = vld [vmem:[%s1 + $0x10] sm:$0xff]
      %v181 = vld [vmem:[%s1 + $0x18] sm:$0xff]
      %vm182 = vcmask 261120
      %v184 = vsel %vm182, %v177, 0
      %186 = vmatprep.subr.mxu0 0.0
      %187 = vmatpush1.msra.mxu0 %v178
      %188 = vmatprep.subr.mxu0 0.0
      %189 = vmatpush1.msra.mxu0 %v179
      %190 = vmatprep.subr.mxu0 0.0
      %191 = vmatpush1.msra.mxu0 %v180
      %192 = vmatprep.subr.mxu0 0.0
      %193 = vmatpush1.msra.mxu0 %v181
      %194 = vmatprep.subr.mxu0 0.0
      %195 = vmatpush1.msra.mxu0 0.0
      %196 = vmatprep.subr.mxu0 0.0
      %197 = vmatpush1.msra.mxu0 0.0
      %198 = vmatprep.subr.mxu0 0.0
      %199 = vmatpush1.msra.mxu0 0.0
      %200 = vmatprep.subr.mxu0 0.0
      %201 = vmatpush1.msra.mxu0 0.0
      %202 = vmatprep.subr.mxu0 0.0
      %203 = vmatpush1.msra.mxu0 0.0
      %204 = vmatprep.subr.mxu0 0.0
      %205 = vmatpush1.msra.mxu0 0.0
      %206 = vmatprep.subr.mxu0 0.0
      %207 = vmatpush1.msra.mxu0 0.0
      %208 = vmatprep.subr.mxu0 0.0
      %209 = vmatpush1.msra.mxu0 0.0
      %210 = vmatprep.subr.mxu0 0.0
      %211 = vmatpush1.msra.mxu0 0.0
      %212 = vmatprep.subr.mxu0 0.0
      %213 = vmatpush1.msra.mxu0 0.0
      %214 = vmatprep.subr.mxu0 0.0
      %215 = vmatpush1.msra.mxu0 0.0
      %216 = vmatprep.subr.mxu0 0.0
      %217 = vmatpush1.msra.mxu0 0.0
      %218 = vmatprep.subr.mxu0 0.0
      %219 = vmatpush1.msra.mxu0 0.0
      %220 = vmatprep.subr.mxu0 0.0
      %221 = vmatpush1.msra.mxu0 0.0
      %222 = vmatprep.subr.mxu0 0.0
      %223 = vmatpush1.msra.mxu0 0.0
      %224 = vmatprep.subr.mxu0 0.0
      %225 = vmatpush1.msra.mxu0 0.0
      %226 = vmatprep.subr.mxu0 0.0
      %227 = vmatpush1.msra.mxu0 0.0
      %228 = vmatprep.subr.mxu0 0.0
      %229 = vmatpush1.msra.mxu0 0.0
      %230 = vmatprep.subr.mxu0 0.0
      %231 = vmatpush1.msra.mxu0 0.0
      %232 = vmatprep.subr.mxu0 0.0
      %233 = vmatpush1.msra.mxu0 0.0
      %234 = vmatprep.subr.mxu0 0.0
      %235 = vmatpush1.msra.mxu0 0.0
      %236 = vmatprep.subr.mxu0 0.0
      %237 = vmatpush1.msra.mxu0 0.0
      %238 = vmatprep.subr.mxu0 0.0
      %239 = vmatpush1.msra.mxu0 0.0
      %240 = vmatprep.subr.mxu0 0.0
      %241 = vmatpush1.msra.mxu0 0.0
      %242 = vmatprep.subr.mxu0 0.0
      %243 = vmatpush1.msra.mxu0 0.0
      %244 = vmatprep.subr.mxu0 0.0
      %245 = vmatpush1.msra.mxu0 0.0
      %246 = vmatprep.subr.mxu0 0.0
      %247 = vmatpush1.msra.mxu0 0.0
      %248 = vmatprep.subr.mxu0 0.0
      %249 = vmatpush1.msra.mxu0 0.0
      %250 = vmatprep.mubr.f32.mxu0 0.0
      %251 = vmatmul.mubr.f32.gmra.mrb[0].mxu0 %v184
      %v252 = vpop.f32.mrb[0].mxu0
      %v253 = vadd.f32 0.0, %v252
      %v254 = vpop.f32.mrb[0].mxu0
      %255 = vdwg.mxu0
      %vm256 = vcmask 64512
      %v257 = vsel %vm256, %v253, -inf
      %258 = vmax.xlane.f32.xlu0 %v257
      %v259 = vpop.xlane.xlu0 %258
      %v260 = vsub.f32 %v253, %v259
      %v261 = vmul.f32 %v260, 1.442695
      %v262 = vpow.pop %v261
      %v263 = vsel %vm256, %v262, 0.0
      %264 = vadd.xlane.f32.xlu0 %v263
      %v265 = vpop.xlane.xlu0 %264
      %v266 = vrcp.pop %v265
      %v267 = vlaneseq
      %v268 = vand.u32 %v267, 127
      %v269 = vsel %vm256, %v262, -inf
      %270 = vmax.xlane.f32.xlu0 %v269
      %v271 = vpop.xlane.xlu0 %270
      %vm272 = vcmp.eq.f32.partialorder %v262, %v271
      %v273 = vsel %vm272, %v268, 8
      %v274 = vsel %vm256, %v273, 2147483647
      %v275 = vand.u32 %v274, 65535
      %v276 = vshra.s32 %v274, 16
      %v277 = vcvt.s32.f32 %v275
      %v278 = vcvt.s32.f32 %v276
      %279 = vmin.xlane.f32.xlu0 %v278
      %v280 = vpop.xlane.xlu0 %279
      %vm281 = vcmp.eq.f32.partialorder %v278, %v280
      %v282 = vsel %vm281, %v277, inf
      %283 = vmin.xlane.f32.xlu0 %v282
      %v284 = vpop.xlane.xlu0 %283
      %v285 = vcvt.f32.s32 %v284
      %v286 = vcvt.f32.s32 %v280
      %v287 = vshll.u32 %v286, 16
      %v288 = vadd.s32 %v287, %v285
      %vm289 = vcmp.eq.s32.totalorder %v268, %v288
      %v290 = vsel %vm289, -inf, %v262
      %v291 = vsel %vm256, %v290, -inf
      %292 = vmax.xlane.f32.xlu0 %v291
      %v293 = vpop.xlane.xlu0 %292
      %vm294 = vcmp.eq.f32.partialorder %v290, %v293
      %v295 = vsel %vm294, %v268, 8
      %v296 = vsel %vm256, %v295, 2147483647
      %v297 = vand.u32 %v296, 65535
      %v298 = vshra.s32 %v296, 16
      %v299 = vcvt.s32.f32 %v297
      %v300 = vcvt.s32.f32 %v298
      %301 = vmin.xlane.f32.xlu0 %v300
      %v302 = vpop.xlane.xlu0 %301
      %vm303 = vcmp.eq.f32.partialorder %v300, %v302
      %v304 = vsel %vm303, %v299, inf
      %305 = vmin.xlane.f32.xlu0 %v304
      %v306 = vpop.xlane.xlu0 %305
      %v307 = vcvt.f32.s32 %v306
      %v308 = vcvt.f32.s32 %v302
      %v309 = vshll.u32 %v308, 16
      %v310 = vadd.s32 %v309, %v307
      %vm311 = vcmask 7168
      %v312 = vsel %vm311, %v288, %v310
      %vm313 = vcmask 15360
      %314 = vst.msk [vmem:[%s172] sm:$0xff] %vm313, %v312
      %v315 = vsel %vm311, %v271, %v293
      %v316 = vmul.f32 %v315, %v266
      %317 = vst.msk [vmem:[%s176] sm:$0xff] %vm313, %v316
      %p318 = scmp.lt.s32.totalorder %s15, 1
      %s319 = scalar_select %p318, %s15, 1
      %s320 = smul.addr %s319, 8
      %s321 = scalar_lea.vmem %s2, %s320
      %p322 = scmp.lt.s32.totalorder %s15, 1
      %s323 = scalar_select %p322, %s15, 1
      %s324 = smul.addr %s323, 8
      %s325 = scalar_lea.vmem %s3, %s324
      // Predicated region
      $region29: #{tpu_custom_call.1} parent=27 // pred_check
        %p326 = pneg %p80
      $region30: #{tpu_custom_call.1} parent=27 // pred_check_branch
        %328 = sbr.rel (%p326) target = $region32
      $region31: #{tpu_custom_call.1} parent=27 // pred_region
        _
      $region32: #{tpu_custom_call.1} parent=27 // pred_fallthru
        _
      // Predicated region
      $region33: #{tpu_custom_call.1} parent=27 // pred_check
        %p329 = pneg %p106
      $region34: #{tpu_custom_call.1} parent=27 // pred_check_branch
        %331 = sbr.rel (%p329) target = $region36
      $region35: #{tpu_custom_call.1} parent=27 // pred_region
        _
      $region36: #{tpu_custom_call.1} parent=27 // pred_fallthru
        _
    $region28: #{tpu_custom_call.1} parent=5 // pred_fallthru
      _
    %p332 = scmp.le.s32.totalorder 2, %s10
    // Predicated region
    $region37: #{tpu_custom_call.1} parent=5 // pred_check
      %p333 = pneg %p332
    $region38: #{tpu_custom_call.1} parent=5 // pred_check_branch
      %335 = sbr.rel (%p333) target = $region40
    $region39: #{tpu_custom_call.1} parent=5 // pred_region
      %s336 = ssub.s32 %s10, 2
      // Predicated region
      $region41: #{tpu_custom_call.1} parent=39 // pred_check
        %p337 = pneg %p86
      $region42: #{tpu_custom_call.1} parent=39 // pred_check_branch
        %339 = sbr.rel (%p337) target = $region44
      $region43: #{tpu_custom_call.1} parent=39 // pred_region
        %p340 = scmp.lt.s32.totalorder %s16, 1
        %s341 = scalar_select %p340, %s16, 1
        %s342 = smul.addr %s341, 8
        %s343 = scalar_lea.vmem %s2, %s342
      $region44: #{tpu_custom_call.1} parent=39 // pred_fallthru
        _
      // Predicated region
      $region45: #{tpu_custom_call.1} parent=39 // pred_check
        %p344 = pneg %p112
      $region46: #{tpu_custom_call.1} parent=39 // pred_check_branch
        %346 = sbr.rel (%p344) target = $region48
      $region47: #{tpu_custom_call.1} parent=39 // pred_region
        %p347 = scmp.lt.s32.totalorder %s16, 1
        %s348 = scalar_select %p347, %s16, 1
        %s349 = smul.addr %s348, 8
        %s350 = scalar_lea.vmem %s3, %s349
      $region48: #{tpu_custom_call.1} parent=39 // pred_fallthru
        _
    $region40: #{tpu_custom_call.1} parent=5 // pred_fallthru
      _
  $region6: #{tpu_custom_call.1} parent=0 // loop_footer
    %s14 = sadd.s32 1, %s10
  $region7: #{tpu_custom_call.1} parent=0 // loop_footer_branch
    %9 = sbr.rel target = $region3
  $region8: #{tpu_custom_call.1} parent=0 // loop_exit
    _

</llo_original>
